<compile_context>
chip_gen: v7x
topology: tpu7x:2x2x1
jax: 0.10.0
libtpu: 0.0.40
codegen_flags: <defaults>
</compile_context>

<pallas_src>
import functools
import math

import numpy as np
import jax
import jax.numpy as jnp
from jax.experimental import pallas as pl
from jax.experimental.pallas import tpu as pltpu

OUT_H, OUT_W = 256, 256  # self.outDim = [256, 256]


# ----------------------------------------------------------------------------
# Host-side (cached) bilinear interpolation matrices, PyTorch semantics.
# ----------------------------------------------------------------------------
def _interp_matrix_np(in_size: int, out_size: int) -> np.ndarray:
    """1-D bilinear interpolation matrix, align_corners=False (PyTorch default)."""
    scale = in_size / out_size
    dst = np.arange(out_size, dtype=np.float64)
    src = np.maximum((dst + 0.5) * scale - 0.5, 0.0)   # clamp below at 0, like PyTorch
    i0 = np.clip(np.floor(src).astype(np.int64), 0, in_size - 1)
    i1 = np.minimum(i0 + 1, in_size - 1)
    w1 = (src - i0).astype(np.float32)
    w0 = (1.0 - w1).astype(np.float32)
    A = np.zeros((out_size, in_size), np.float32)
    rows = np.arange(out_size)
    np.add.at(A, (rows, i0), w0)
    np.add.at(A, (rows, i1), w1)   # coincident taps (i0 == i1) sum to weight 1
    return A


@functools.lru_cache(maxsize=None)
def _interp_matrices(in_dim: int, in_p: int, out_h: int, out_w: int):
    """A_h (out_h, in_p) and A_wT (in_p, out_w), zero-padded in_dim -> in_p."""
    a_h = _interp_matrix_np(in_dim, out_h)          # (out_h, in_dim)
    a_wt = _interp_matrix_np(in_dim, out_w).T       # (in_dim, out_w)
    a_h_p = np.zeros((out_h, in_p), np.float32)
    a_h_p[:, :in_dim] = a_h
    a_wt_p = np.zeros((in_p, out_w), np.float32)
    a_wt_p[:in_dim, :] = a_wt
    return jnp.asarray(a_h_p), jnp.asarray(a_wt_p)


# ----------------------------------------------------------------------------
# Per-chip tuning helpers.
# ----------------------------------------------------------------------------
def _tpu_vmem_capacity_bytes() -> int:
    try:
        return int(pltpu.get_tpu_info().vmem_capacity_bytes)
    except Exception:
        return 0  # unknown -> pick conservative settings


def _choose_bt(B: int, max_bt: int) -> int:
    """Batch-tile size: as large as possible (<= max_bt), balanced across steps."""
    if B <= max_bt:
        return B
    n_steps = -(-B // max_bt)        # ceil(B / max_bt)
    return -(-B // n_steps)          # balanced tile (minimizes batch padding)


# ----------------------------------------------------------------------------
# Kernel.
# ----------------------------------------------------------------------------
def _bilinear_kernel(img_ref, ah_ref, awt_ref, o_ref):
    # img_ref : (Bt*in_p, in_p)  flattened batch tile of zero-padded images
    # ah_ref  : (256, in_p)      row-interpolation weights (zero-padded cols)
    # awt_ref : (in_p, 256)      col-interpolation weights (zero-padded rows)
    # o_ref   : (Bt, 256, 256)
    bt = o_ref.shape[0]
    in_p = awt_ref.shape[0]

    ah = ah_ref[...]                # (256, in_p)  ~8 KiB, hoisted out of the loop
    awt = awt_ref[...]              # (in_p, 256)

    # Per-element: both matmuls together so only one (in_p, 256) slice is live
    # at a time; results stream straight into o_ref[b]. Compute is <1% of the
    # HBM-writeback roofline, so a static unrolled loop is fine.
    for b in range(bt):
        img_b = img_ref[pl.ds(b * in_p, in_p), :]                       # (in_p, in_p)
        tmp = jnp.dot(img_b, awt, preferred_element_type=jnp.float32)   # (in_p, 256)
        o_ref[b] = jnp.dot(ah, tmp,
                           preferred_element_type=jnp.float32).astype(o_ref.dtype)


# ----------------------------------------------------------------------------
# Wrapper (forward pass of bilinearImputation).
# ----------------------------------------------------------------------------
def bilinear_imputation_forward(batchX, W, *, out_dtype=jnp.float32):
    """batchX: (B, F) f32, W: (F,) f32 parameter. Returns (B, 1, 256, 256)."""
    B, F = batchX.shape
    in_dim = math.ceil(math.sqrt(F))            # self.inDim
    in_p = max(8, ((in_dim + 7) // 8) * 8)      # sublane-padded image side
    target = in_dim * in_dim                    # targetSize

    # torch.take(batchX, construct_indices(clamp(W.int64, 0, 29), B, F))
    # == per-row gather of columns clamp(W, 0, 29). The module hard-codes 29; we
    # additionally bound by F-1 so indices stay valid when F < 30.
    idx = jnp.clip(W.astype(jnp.int32), 0, min(29, F - 1))
    taken = jnp.take(batchX, idx, axis=1)                        # (B, F)
    # TODO(synk): in-place batchX.data.copy_(taken) has no functional equivalent;
    # the gathered tensor is used directly.

    # F.pad(..., (0, paddingOffset)) then reshape to (B, inDim, inDim); extra
    # zero-padding to (B, in_p, in_p) is cancelled by the zero-padded weight
    # rows/cols so results are unchanged.
    padded = jnp.pad(taken, ((0, 0), (0, target - F)))
    img = padded.reshape(B, in_dim, in_dim).astype(jnp.float32)
    img = jnp.pad(img, ((0, 0), (0, in_p - in_dim), (0, in_p - in_dim)))

    # Per-generation tile sizes: 128-MiB-VMEM parts (v5e/v6e) take Bt up to 64;
    # 64-MiB parts (v7x-class) cap at 32. Unknown -> conservative (32 / 32 MiB).
    vmem_cap = _tpu_vmem_capacity_bytes()
    large_vmem = vmem_cap >= 100 * 1024 * 1024
    small_vmem_chip = 0 < vmem_cap < 100 * 1024 * 1024   # v7x-class (2 TCs)
    max_bt = 64 if large_vmem else 32
    vmem_limit = (64 if large_vmem else 32) * 1024 * 1024

    bt = _choose_bt(B, max_bt)
    n_steps = -(-B // bt)
    b_pad = n_steps * bt
    if b_pad != B:
        img = jnp.pad(img, ((0, b_pad - B), (0, 0), (0, 0)))

    # Flatten in HBM layout (free: same contiguous bytes) so the kernel needs no
    # in-kernel reshape / relayout copy.
    img_flat = img.reshape(b_pad * in_p, in_p)                   # (b_pad*in_p, in_p)

    A_h, A_wT = _interp_matrices(in_dim, in_p, OUT_H, OUT_W)     # cached, host-built

    out_isize = jnp.dtype(out_dtype).itemsize
    cost = pl.CostEstimate(
        flops=2 * b_pad * (in_p * in_p * OUT_W + OUT_H * in_p * OUT_W),
        transcendentals=0,
        bytes_accessed=b_pad * (OUT_H * OUT_W * out_isize + in_p * in_p * 4)
                       + 4 * in_p * (OUT_H + OUT_W),
    )

    def run(dim_sems):
        return pl.pallas_call(
            _bilinear_kernel,
            out_shape=jax.ShapeDtypeStruct((b_pad, OUT_H, OUT_W), out_dtype),
            grid_spec=pl.GridSpec(
                grid=(n_steps,),
                in_specs=[
                    pl.BlockSpec((bt * in_p, in_p), lambda i: (i, 0)),
                    pl.BlockSpec((OUT_H, in_p), lambda i: (0, 0)),
                    pl.BlockSpec((in_p, OUT_W), lambda i: (0, 0)),
                ],
                out_specs=pl.BlockSpec((bt, OUT_H, OUT_W), lambda i: (i, 0, 0)),
            ),
            compiler_params=pltpu.CompilerParams(
                dimension_semantics=dim_sems,
                vmem_limit_bytes=vmem_limit,
            ),
            cost_estimate=cost,
        )(img_flat, A_h, A_wT)

    # On v7x-class parts, try to shard the batch grid axis across both
    # TensorCores (plain "parallel" doesn't change codegen); fall back cleanly.
    candidates = []
    if small_vmem_chip and n_steps >= 2:
        candidates.append((pltpu.CORE_PARALLEL,))
    candidates.append(("parallel",))

    out = None
    for k, sems in enumerate(candidates):
        try:
            out = run(sems)
            break
        except Exception:
            if k == len(candidates) - 1:
                raise

    # NCHW output to match torch.nn.functional.interpolate: (B, 1, 256, 256)
    return out[:B, None, :, :]


if __name__ == "__main__":
    # The hard-coded clamp(..., 0, 29) implies 30 input features;
    # inDim = ceil(sqrt(30)) = 6; output is fixed 256x256.
    B, F = 2, 30
    key = jax.random.PRNGKey(0)
    batchX = jax.random.normal(key, (B, F), dtype=jnp.float32)

    # Deterministic parameter init, as in __init__: W = arange(0, X.shape[1]) f32
    W = jnp.arange(F, dtype=jnp.float32)

    out = bilinear_imputation_forward(batchX, W)
    out = jax.block_until_ready(out)
    assert out.shape == (B, 1, 256, 256), out.shape
    assert out.dtype == jnp.float32
    print("KERNEL_OK")
</pallas_src>

<mosaic_0001>
module attributes {stable_mosaic.version = 11 : i64} {
  func.func @_bilinear_kernel(%arg0: i32, %arg1: memref<16x8xf32, #tpu.memory_space<vmem>>, %arg2: memref<256x8xf32, #tpu.memory_space<vmem>>, %arg3: memref<8x256xf32, #tpu.memory_space<vmem>>, %arg4: memref<2x256x256xf32, #tpu.memory_space<vmem>>) attributes {dimension_semantics = [#tpu.dimension_semantics<parallel>], iteration_bounds = array<i64: 1>, scalar_prefetch = 0 : i64, scratch_operands = 0 : i64, tpu.core_type = #tpu.core_type<tc>, window_params = [{transform_indices = @transform_0, window_bounds = array<i64: 16, 8>}, {pipeline_mode = #tpu.pipeline_mode<synchronous>, transform_indices = @transform_1, window_bounds = array<i64: 256, 8>}, {pipeline_mode = #tpu.pipeline_mode<synchronous>, transform_indices = @transform_2, window_bounds = array<i64: 8, 256>}, {transform_indices = @transform_3, window_bounds = array<i64: 2, 256, 256>}]} {
    %c0 = arith.constant 0 : index
    %c0_0 = arith.constant 0 : index
    %0 = vector.load %arg2[%c0, %c0_0] : memref<256x8xf32, #tpu.memory_space<vmem>>, vector<256x8xf32>
    %c0_1 = arith.constant 0 : index
    %c0_2 = arith.constant 0 : index
    %1 = vector.load %arg3[%c0_1, %c0_2] : memref<8x256xf32, #tpu.memory_space<vmem>>, vector<8x256xf32>
    %c0_3 = arith.constant 0 : index
    %c0_4 = arith.constant 0 : index
    %2 = vector.load %arg1[%c0_3, %c0_4] : memref<16x8xf32, #tpu.memory_space<vmem>>, vector<8x8xf32>
    %cst = arith.constant dense<0.000000e+00> : vector<8x256xf32>
    %3 = tpu.matmul %2, %1, %cst {dimension_numbers = #tpu.dot_dimension_numbers<[1], [0], [0], [1], [0, 0, 1, 1], [], []>} : vector<8x8xf32>, vector<8x256xf32>, vector<8x256xf32> -> vector<8x256xf32>
    %cst_5 = arith.constant dense<0.000000e+00> : vector<256x256xf32>
    %4 = tpu.matmul %0, %3, %cst_5 {dimension_numbers = #tpu.dot_dimension_numbers<[1], [0], [0], [1], [0, 0, 1, 1], [], []>} : vector<256x8xf32>, vector<8x256xf32>, vector<256x256xf32> -> vector<256x256xf32>
    %c0_6 = arith.constant 0 : index
    %c0_7 = arith.constant 0 : index
    %c0_8 = arith.constant 0 : index
    %5 = vector.load %arg4[%c0_6, %c0_7, %c0_8] : memref<2x256x256xf32, #tpu.memory_space<vmem>>, vector<1x256x256xf32>
    %6 = vector.shape_cast %5 : vector<1x256x256xf32> to vector<256x256xf32>
    %7 = vector.shape_cast %4 : vector<256x256xf32> to vector<1x256x256xf32>
    tpu.vector_store %arg4[%c0_6, %c0_7, %c0_8], %7 {strides = array<i32>} : memref<2x256x256xf32, #tpu.memory_space<vmem>>, vector<1x256x256xf32>,
    %c8 = arith.constant 8 : index
    %c0_9 = arith.constant 0 : index
    %8 = vector.load %arg1[%c8, %c0_9] : memref<16x8xf32, #tpu.memory_space<vmem>>, vector<8x8xf32>
    %cst_10 = arith.constant dense<0.000000e+00> : vector<8x256xf32>
    %9 = tpu.matmul %8, %1, %cst_10 {dimension_numbers = #tpu.dot_dimension_numbers<[1], [0], [0], [1], [0, 0, 1, 1], [], []>} : vector<8x8xf32>, vector<8x256xf32>, vector<8x256xf32> -> vector<8x256xf32>
    %cst_11 = arith.constant dense<0.000000e+00> : vector<256x256xf32>
    %10 = tpu.matmul %0, %9, %cst_11 {dimension_numbers = #tpu.dot_dimension_numbers<[1], [0], [0], [1], [0, 0, 1, 1], [], []>} : vector<256x8xf32>, vector<8x256xf32>, vector<256x256xf32> -> vector<256x256xf32>
    %c1 = arith.constant 1 : index
    %c0_12 = arith.constant 0 : index
    %c0_13 = arith.constant 0 : index
    %11 = vector.load %arg4[%c1, %c0_12, %c0_13] : memref<2x256x256xf32, #tpu.memory_space<vmem>>, vector<1x256x256xf32>
    %12 = vector.shape_cast %11 : vector<1x256x256xf32> to vector<256x256xf32>
    %13 = vector.shape_cast %10 : vector<256x256xf32> to vector<1x256x256xf32>
    tpu.vector_store %arg4[%c1, %c0_12, %c0_13], %13 {strides = array<i32>} : memref<2x256x256xf32, #tpu.memory_space<vmem>>, vector<1x256x256xf32>,
    return
  }
  func.func @transform_0(%arg0: i32) -> (i32, i32) {
    %c0_i32 = arith.constant 0 : i32
    %c0_i32_0 = arith.constant 0 : i32
    return %arg0, %c0_i32 : i32, i32
  }
  func.func @transform_1(%arg0: i32) -> (i32, i32) {
    %c0_i32 = arith.constant 0 : i32
    %c0_i32_0 = arith.constant 0 : i32
    %c0_i32_1 = arith.constant 0 : i32
    return %c0_i32, %c0_i32_0 : i32, i32
  }
  func.func @transform_2(%arg0: i32) -> (i32, i32) {
    %c0_i32 = arith.constant 0 : i32
    %c0_i32_0 = arith.constant 0 : i32
    %c0_i32_1 = arith.constant 0 : i32
    return %c0_i32, %c0_i32_0 : i32, i32
  }
  func.func @transform_3(%arg0: i32) -> (i32, i32, i32) {
    %c0_i32 = arith.constant 0 : i32
    %c0_i32_0 = arith.constant 0 : i32
    %c0_i32_1 = arith.constant 0 : i32
    return %arg0, %c0_i32, %c0_i32_0 : i32, i32, i32
  }
}

</mosaic_0001>

<llo_original>
// kernel: tpu_custom_call.1
$region0: #{tpu_custom_call.1}
  #allocation0 [shape = 'u32[]', space=smem, size = 0x4, offset = 0x4, fixed_abs, tag = 'smem constant byte address 0x4 - core index']
  #allocation1 [shape = 'u32[144,128]{1,0:T(1,128)}', space=vmem, size = 0x12000, scoped, tag = 'internal scratch']
  %s0 = inlined_call_operand.vmem [shape: f32[16,8], index: 0, kind: input, shape index: {}]
  %s1 = inlined_call_operand.vmem [shape: f32[256,8], index: 1, kind: input, shape index: {}]
  %s2 = inlined_call_operand.vmem [shape: f32[8,256], index: 2, kind: input, shape index: {}]
  %s3 = inlined_call_operand.hbm [shape: f32[2,256,256], index: 3, kind: output, shape index: {}]
  %s4 = sld [smem:[#allocation0]]
  $region22: #{tpu_custom_call.1} parent=0
    _
  %s6 = ssub.s32 1, %s4
  %s7 = scalar_select 0, %s6, %s4
  $region1: #{tpu_custom_call.1} parent=0
    #allocation2 [shape = 'u8[524288]{0}', space=vmem, size = 0x80000, scoped, tag = 'output window, operand 0, single buffered']
    #allocation3 [shape = 's32[1]{0}', space=sflag, size = 0x4, scoped, tag = 'scoped memory for tpu_custom_call.1']
    %8 = vsyncpa [#allocation3], 0
    // Predicated region
    $region2: #{tpu_custom_call.1} parent=1 // pred_check
      _
    $region3: #{tpu_custom_call.1} parent=1 // pred_check_branch
      %10 = sbr.rel (0) target = $region5
    $region4: #{tpu_custom_call.1} parent=1 // pred_region
      _
    $region5: #{tpu_custom_call.1} parent=1 // pred_fallthru
      _
    // Predicated region
    $region6: #{tpu_custom_call.1} parent=1 // pred_check
      _
    $region7: #{tpu_custom_call.1} parent=1 // pred_check_branch
      %12 = sbr.rel (0) target = $region9
    $region8: #{tpu_custom_call.1} parent=1 // pred_region
      _
    $region9: #{tpu_custom_call.1} parent=1 // pred_fallthru
      _
    // Predicated region
    $region10: #{tpu_custom_call.1} parent=1 // pred_check
      _
    $region11: #{tpu_custom_call.1} parent=1 // pred_check_branch
      %14 = sbr.rel (0) target = $region13
    $region12: #{tpu_custom_call.1} parent=1 // pred_region
      _
    $region13: #{tpu_custom_call.1} parent=1 // pred_fallthru
      _
    %v15 = vld [vmem:[%s1] sm:$0xff]
    %v16 = vld [vmem:[%s1 + $0x8] sm:$0xff]
    %v17 = vld [vmem:[%s1 + $0x10] sm:$0xff]
    %v18 = vld [vmem:[%s1 + $0x18] sm:$0xff]
    %v19 = vld [vmem:[%s1 + $0x20] sm:$0xff]
    %v20 = vld [vmem:[%s1 + $0x28] sm:$0xff]
    %v21 = vld [vmem:[%s1 + $0x30] sm:$0xff]
    %v22 = vld [vmem:[%s1 + $0x38] sm:$0xff]
    %v23 = vld [vmem:[%s1 + $0x40] sm:$0xff]
    %v24 = vld [vmem:[%s1 + $0x48] sm:$0xff]
    %v25 = vld [vmem:[%s1 + $0x50] sm:$0xff]
    %v26 = vld [vmem:[%s1 + $0x58] sm:$0xff]
    %v27 = vld [vmem:[%s1 + $0x60] sm:$0xff]
    %v28 = vld [vmem:[%s1 + $0x68] sm:$0xff]
    %v29 = vld [vmem:[%s1 + $0x70] sm:$0xff]
    %v30 = vld [vmem:[%s1 + $0x78] sm:$0xff]
    %v31 = vld [vmem:[%s1 + $0x80] sm:$0xff]
    %v32 = vld [vmem:[%s1 + $0x88] sm:$0xff]
    %v33 = vld [vmem:[%s1 + $0x90] sm:$0xff]
    %v34 = vld [vmem:[%s1 + $0x98] sm:$0xff]
    %v35 = vld [vmem:[%s1 + $0xa0] sm:$0xff]
    %v36 = vld [vmem:[%s1 + $0xa8] sm:$0xff]
    %v37 = vld [vmem:[%s1 + $0xb0] sm:$0xff]
    %v38 = vld [vmem:[%s1 + $0xb8] sm:$0xff]
    %v39 = vld [vmem:[%s1 + $0xc0] sm:$0xff]
    %v40 = vld [vmem:[%s1 + $0xc8] sm:$0xff]
    %v41 = vld [vmem:[%s1 + $0xd0] sm:$0xff]
    %v42 = vld [vmem:[%s1 + $0xd8] sm:$0xff]
    %v43 = vld [vmem:[%s1 + $0xe0] sm:$0xff]
    %v44 = vld [vmem:[%s1 + $0xe8] sm:$0xff]
    %v45 = vld [vmem:[%s1 + $0xf0] sm:$0xff]
    %v46 = vld [vmem:[%s1 + $0xf8] sm:$0xff]
    %v47 = vld [vmem:[%s2] sm:$0xff]
    %v48 = vld [vmem:[%s2 + $0x8] sm:$0xff]
    %v49 = vld [vmem:[%s0] sm:$0xff]
    %vm50 = vcmask 64512
    %v52 = vsel %vm50, %v49, 0
    %54 = vmatprep.subr.mxu0 %v48
    %55 = vmatpush1.msra.mxu0 %v47
    %56 = vmatprep.subr.mxu0 0.0
    %57 = vmatpush1.msra.mxu0 0.0
    %58 = vmatprep.subr.mxu0 0.0
    %59 = vmatpush1.msra.mxu0 0.0
    %60 = vmatprep.subr.mxu0 0.0
    %61 = vmatpush1.msra.mxu0 0.0
    %62 = vmatprep.subr.mxu0 0.0
    %63 = vmatpush1.msra.mxu0 0.0
    %64 = vmatprep.subr.mxu0 0.0
    %65 = vmatpush1.msra.mxu0 0.0
    %66 = vmatprep.subr.mxu0 0.0
    %67 = vmatpush1.msra.mxu0 0.0
    %68 = vmatprep.subr.mxu0 0.0
    %69 = vmatpush1.msra.mxu0 0.0
    %70 = vmatprep.subr.mxu0 0.0
    %71 = vmatpush1.msra.mxu0 0.0
    %72 = vmatprep.subr.mxu0 0.0
    %73 = vmatpush1.msra.mxu0 0.0
    %74 = vmatprep.subr.mxu0 0.0
    %75 = vmatpush1.msra.mxu0 0.0
    %76 = vmatprep.subr.mxu0 0.0
    %77 = vmatpush1.msra.mxu0 0.0
    %78 = vmatprep.subr.mxu0 0.0
    %79 = vmatpush1.msra.mxu0 0.0
    %80 = vmatprep.subr.mxu0 0.0
    %81 = vmatpush1.msra.mxu0 0.0
    %82 = vmatprep.subr.mxu0 0.0
    %83 = vmatpush1.msra.mxu0 0.0
    %84 = vmatprep.subr.mxu0 0.0
    %85 = vmatpush1.msra.mxu0 0.0
    %86 = vmatprep.subr.mxu0 0.0
    %87 = vmatpush1.msra.mxu0 0.0
    %88 = vmatprep.subr.mxu0 0.0
    %89 = vmatpush1.msra.mxu0 0.0
    %90 = vmatprep.subr.mxu0 0.0
    %91 = vmatpush1.msra.mxu0 0.0
    %92 = vmatprep.subr.mxu0 0.0
    %93 = vmatpush1.msra.mxu0 0.0
    %94 = vmatprep.subr.mxu0 0.0
    %95 = vmatpush1.msra.mxu0 0.0
    %96 = vmatprep.subr.mxu0 0.0
    %97 = vmatpush1.msra.mxu0 0.0
    %98 = vmatprep.subr.mxu0 0.0
    %99 = vmatpush1.msra.mxu0 0.0
    %100 = vmatprep.subr.mxu0 0.0
    %101 = vmatpush1.msra.mxu0 0.0
    %102 = vmatprep.subr.mxu0 0.0
    %103 = vmatpush1.msra.mxu0 0.0
    %104 = vmatprep.subr.mxu0 0.0
    %105 = vmatpush1.msra.mxu0 0.0
    %106 = vmatprep.subr.mxu0 0.0
    %107 = vmatpush1.msra.mxu0 0.0
    %108 = vmatprep.subr.mxu0 0.0
    %109 = vmatpush1.msra.mxu0 0.0
    %110 = vmatprep.subr.mxu0 0.0
    %111 = vmatpush1.msra.mxu0 0.0
    %112 = vmatprep.subr.mxu0 0.0
    %113 = vmatpush1.msra.mxu0 0.0
    %114 = vmatprep.subr.mxu0 0.0
    %115 = vmatpush1.msra.mxu0 0.0
    %116 = vmatprep.subr.mxu0 0.0
    %117 = vmatpush1.msra.mxu0 0.0
    %118 = vmatprep.mubr.f32.mxu0 0.0
    %119 = vmatmul.mubr.f32.gmra.mrb[0].mxu0 %v52
    %v120 = vpop.f32.mrb[0].mxu0
    %v121 = vadd.f32 0.0, %v120
    %v122 = vpop.f32.mrb[0].mxu0
    %v123 = vadd.f32 0.0, %v122
    %124 = vdwg.mxu0
    %v126 = vsel %vm50, %v15, 0
    %v129 = vsel %vm50, %v16, 0
    %v132 = vsel %vm50, %v17, 0
    %v135 = vsel %vm50, %v18, 0
    %v138 = vsel %vm50, %v19, 0
    %v141 = vsel %vm50, %v20, 0
    %v144 = vsel %vm50, %v21, 0
    %v147 = vsel %vm50, %v22, 0
    %v150 = vsel %vm50, %v23, 0
    %v153 = vsel %vm50, %v24, 0
    %v156 = vsel %vm50, %v25, 0
    %v159 = vsel %vm50, %v26, 0
    %v162 = vsel %vm50, %v27, 0
    %v165 = vsel %vm50, %v28, 0
    %v168 = vsel %vm50, %v29, 0
    %v171 = vsel %vm50, %v30, 0
    %v174 = vsel %vm50, %v31, 0
    %v177 = vsel %vm50, %v32, 0
    %v180 = vsel %vm50, %v33, 0
    %v183 = vsel %vm50, %v34, 0
    %v186 = vsel %vm50, %v35, 0
    %v189 = vsel %vm50, %v36, 0
    %v192 = vsel %vm50, %v37, 0
    %v195 = vsel %vm50, %v38, 0
    %v198 = vsel %vm50, %v39, 0
    %v201 = vsel %vm50, %v40, 0
    %v204 = vsel %vm50, %v41, 0
    %v207 = vsel %vm50, %v42, 0
    %v210 = vsel %vm50, %v43, 0
    %v213 = vsel %vm50, %v44, 0
    %v216 = vsel %vm50, %v45, 0
    %v219 = vsel %vm50, %v46, 0
    %221 = vmatprep.subr.mxu0 %v123
    %222 = vmatpush1.msra.mxu0 %v121
    %223 = vmatprep.subr.mxu0 0.0
    %224 = vmatpush1.msra.mxu0 0.0
    %225 = vmatprep.subr.mxu0 0.0
    %226 = vmatpush1.msra.mxu0 0.0
    %227 = vmatprep.subr.mxu0 0.0
    %228 = vmatpush1.msra.mxu0 0.0
    %229 = vmatprep.subr.mxu0 0.0
    %230 = vmatpush1.msra.mxu0 0.0
    %231 = vmatprep.subr.mxu0 0.0
    %232 = vmatpush1.msra.mxu0 0.0
    %233 = vmatprep.subr.mxu0 0.0
    %234 = vmatpush1.msra.mxu0 0.0
    %235 = vmatprep.subr.mxu0 0.0
    %236 = vmatpush1.msra.mxu0 0.0
    %237 = vmatprep.subr.mxu0 0.0
    %238 = vmatpush1.msra.mxu0 0.0
    %239 = vmatprep.subr.mxu0 0.0
    %240 = vmatpush1.msra.mxu0 0.0
    %241 = vmatprep.subr.mxu0 0.0
    %242 = vmatpush1.msra.mxu0 0.0
    %243 = vmatprep.subr.mxu0 0.0
    %244 = vmatpush1.msra.mxu0 0.0
    %245 = vmatprep.subr.mxu0 0.0
    %246 = vmatpush1.msra.mxu0 0.0
    %247 = vmatprep.subr.mxu0 0.0
    %248 = vmatpush1.msra.mxu0 0.0
    %249 = vmatprep.subr.mxu0 0.0
    %250 = vmatpush1.msra.mxu0 0.0
    %251 = vmatprep.subr.mxu0 0.0
    %252 = vmatpush1.msra.mxu0 0.0
    %253 = vmatprep.subr.mxu0 0.0
    %254 = vmatpush1.msra.mxu0 0.0
    %255 = vmatprep.subr.mxu0 0.0
    %256 = vmatpush1.msra.mxu0 0.0
    %257 = vmatprep.subr.mxu0 0.0
    %258 = vmatpush1.msra.mxu0 0.0
    %259 = vmatprep.subr.mxu0 0.0
    %260 = vmatpush1.msra.mxu0 0.0
    %261 = vmatprep.subr.mxu0 0.0
    %262 = vmatpush1.msra.mxu0 0.0
    %263 = vmatprep.subr.mxu0 0.0
    %264 = vmatpush1.msra.mxu0 0.0
    %265 = vmatprep.subr.mxu0 0.0
    %266 = vmatpush1.msra.mxu0 0.0
    %267 = vmatprep.subr.mxu0 0.0
    %268 = vmatpush1.msra.mxu0 0.0
    %269 = vmatprep.subr.mxu0 0.0
    %270 = vmatpush1.msra.mxu0 0.0
    %271 = vmatprep.subr.mxu0 0.0
    %272 = vmatpush1.msra.mxu0 0.0
    %273 = vmatprep.subr.mxu0 0.0
    %274 = vmatpush1.msra.mxu0 0.0
    %275 = vmatprep.subr.mxu0 0.0
    %276 = vmatpush1.msra.mxu0 0.0
    %277 = vmatprep.subr.mxu0 0.0
    %278 = vmatpush1.msra.mxu0 0.0
    %279 = vmatprep.subr.mxu0 0.0
    %280 = vmatpush1.msra.mxu0 0.0
    %281 = vmatprep.subr.mxu0 0.0
    %282 = vmatpush1.msra.mxu0 0.0
    %283 = vmatprep.subr.mxu0 0.0
    %284 = vmatpush1.msra.mxu0 0.0
    %285 = vmatprep.mubr.f32.mxu0 0.0
    %286 = vmatmul.mubr.f32.gmra.mrb[0].mxu0 %v126
    %v287 = vpop.f32.mrb[0].mxu0
    %v288 = vadd.f32 0.0, %v287
    %v289 = vpop.f32.mrb[0].mxu0
    %v290 = vadd.f32 0.0, %v289
    %291 = vmatprep.mubr.f32.mxu0 0.0
    %292 = vmatmul.mubr.f32.gmra.mrb[0].mxu0 %v129
    %v293 = vpop.f32.mrb[0].mxu0
    %v294 = vadd.f32 0.0, %v293
    %v295 = vpop.f32.mrb[0].mxu0
    %v296 = vadd.f32 0.0, %v295
    %297 = vmatprep.mubr.f32.mxu0 0.0
    %298 = vmatmul.mubr.f32.gmra.mrb[0].mxu0 %v132
    %v299 = vpop.f32.mrb[0].mxu0
    %v300 = vadd.f32 0.0, %v299
    %v301 = vpop.f32.mrb[0].mxu0
    %v302 = vadd.f32 0.0, %v301
    %303 = vmatprep.mubr.f32.mxu0 0.0
    %304 = vmatmul.mubr.f32.gmra.mrb[0].mxu0 %v135
    %v305 = vpop.f32.mrb[0].mxu0
    %v306 = vadd.f32 0.0, %v305
    %v307 = vpop.f32.mrb[0].mxu0
    %v308 = vadd.f32 0.0, %v307
    %309 = vmatprep.mubr.f32.mxu0 0.0
    %310 = vmatmul.mubr.f32.gmra.mrb[0].mxu0 %v138
    %v311 = vpop.f32.mrb[0].mxu0
    %v312 = vadd.f32 0.0, %v311
    %v313 = vpop.f32.mrb[0].mxu0
    %v314 = vadd.f32 0.0, %v313
    %315 = vmatprep.mubr.f32.mxu0 0.0
    %316 = vmatmul.mubr.f32.gmra.mrb[0].mxu0 %v141
    %v317 = vpop.f32.mrb[0].mxu0
    %v318 = vadd.f32 0.0, %v317
    %v319 = vpop.f32.mrb[0].mxu0
    %v320 = vadd.f32 0.0, %v319
    %321 = vmatprep.mubr.f32.mxu0 0.0
    %322 = vmatmul.mubr.f32.gmra.mrb[0].mxu0 %v144
    %v323 = vpop.f32.mrb[0].mxu0
    %v324 = vadd.f32 0.0, %v323
    %v325 = vpop.f32.mrb[0].mxu0
    %v326 = vadd.f32 0.0, %v325
    %327 = vmatprep.mubr.f32.mxu0 0.0
    %328 = vmatmul.mubr.f32.gmra.mrb[0].mxu0 %v147
    %v329 = vpop.f32.mrb[0].mxu0
    %v330 = vadd.f32 0.0, %v329
    %v331 = vpop.f32.mrb[0].mxu0
    %v332 = vadd.f32 0.0, %v331
    %333 = vmatprep.mubr.f32.mxu0 0.0
    %334 = vmatmul.mubr.f32.gmra.mrb[0].mxu0 %v150
    %v335 = vpop.f32.mrb[0].mxu0
    %v336 = vadd.f32 0.0, %v335
    %v337 = vpop.f32.mrb[0].mxu0
    %v338 = vadd.f32 0.0, %v337
    %339 = vmatprep.mubr.f32.mxu0 0.0
    %340 = vmatmul.mubr.f32.gmra.mrb[0].mxu0 %v153
    %v341 = vpop.f32.mrb[0].mxu0
    %v342 = vadd.f32 0.0, %v341
    %v343 = vpop.f32.mrb[0].mxu0
    %v344 = vadd.f32 0.0, %v343
    %345 = vmatprep.mubr.f32.mxu0 0.0
    %346 = vmatmul.mubr.f32.gmra.mrb[0].mxu0 %v156
    %v347 = vpop.f32.mrb[0].mxu0
    %v348 = vadd.f32 0.0, %v347
    %v349 = vpop.f32.mrb[0].mxu0
    %v350 = vadd.f32 0.0, %v349
    %351 = vmatprep.mubr.f32.mxu0 0.0
    %352 = vmatmul.mubr.f32.gmra.mrb[0].mxu0 %v159
    %v353 = vpop.f32.mrb[0].mxu0
    %v354 = vadd.f32 0.0, %v353
    %v355 = vpop.f32.mrb[0].mxu0
    %v356 = vadd.f32 0.0, %v355
    %357 = vmatprep.mubr.f32.mxu0 0.0
    %358 = vmatmul.mubr.f32.gmra.mrb[0].mxu0 %v162
    %v359 = vpop.f32.mrb[0].mxu0
    %v360 = vadd.f32 0.0, %v359
    %v361 = vpop.f32.mrb[0].mxu0
    %v362 = vadd.f32 0.0, %v361
    %363 = vmatprep.mubr.f32.mxu0 0.0
    %364 = vmatmul.mubr.f32.gmra.mrb[0].mxu0 %v165
    %v365 = vpop.f32.mrb[0].mxu0
    %v366 = vadd.f32 0.0, %v365
    %v367 = vpop.f32.mrb[0].mxu0
    %v368 = vadd.f32 0.0, %v367
    %369 = vmatprep.mubr.f32.mxu0 0.0
    %370 = vmatmul.mubr.f32.gmra.mrb[0].mxu0 %v168
    %v371 = vpop.f32.mrb[0].mxu0
    %v372 = vadd.f32 0.0, %v371
    %v373 = vpop.f32.mrb[0].mxu0
    %v374 = vadd.f32 0.0, %v373
    %375 = vmatprep.mubr.f32.mxu0 0.0
    %376 = vmatmul.mubr.f32.gmra.mrb[0].mxu0 %v171
    %v377 = vpop.f32.mrb[0].mxu0
    %v378 = vadd.f32 0.0, %v377
    %v379 = vpop.f32.mrb[0].mxu0
    %v380 = vadd.f32 0.0, %v379
    %381 = vmatprep.mubr.f32.mxu0 0.0
    %382 = vmatmul.mubr.f32.gmra.mrb[0].mxu0 %v174
    %v383 = vpop.f32.mrb[0].mxu0
    %v384 = vadd.f32 0.0, %v383
    %v385 = vpop.f32.mrb[0].mxu0
    %v386 = vadd.f32 0.0, %v385
    %387 = vmatprep.mubr.f32.mxu0 0.0
    %388 = vmatmul.mubr.f32.gmra.mrb[0].mxu0 %v177
    %v389 = vpop.f32.mrb[0].mxu0
    %v390 = vadd.f32 0.0, %v389
    %v391 = vpop.f32.mrb[0].mxu0
    %v392 = vadd.f32 0.0, %v391
    %393 = vmatprep.mubr.f32.mxu0 0.0
    %394 = vmatmul.mubr.f32.gmra.mrb[0].mxu0 %v180
    %v395 = vpop.f32.mrb[0].mxu0
    %v396 = vadd.f32 0.0, %v395
    %v397 = vpop.f32.mrb[0].mxu0
    %v398 = vadd.f32 0.0, %v397
    %399 = vmatprep.mubr.f32.mxu0 0.0
    %400 = vmatmul.mubr.f32.gmra.mrb[0].mxu0 %v183
    %v401 = vpop.f32.mrb[0].mxu0
    %v402 = vadd.f32 0.0, %v401
    %v403 = vpop.f32.mrb[0].mxu0
    %v404 = vadd.f32 0.0, %v403
    %405 = vmatprep.mubr.f32.mxu0 0.0
    %406 = vmatmul.mubr.f32.gmra.mrb[0].mxu0 %v186
    %v407 = vpop.f32.mrb[0].mxu0
    %v408 = vadd.f32 0.0, %v407
    %v409 = vpop.f32.mrb[0].mxu0
    %v410 = vadd.f32 0.0, %v409
    %411 = vmatprep.mubr.f32.mxu0 0.0
    %412 = vmatmul.mubr.f32.gmra.mrb[0].mxu0 %v189
    %v413 = vpop.f32.mrb[0].mxu0
    %v414 = vadd.f32 0.0, %v413
    %v415 = vpop.f32.mrb[0].mxu0
    %v416 = vadd.f32 0.0, %v415
    %417 = vmatprep.mubr.f32.mxu0 0.0
    %418 = vmatmul.mubr.f32.gmra.mrb[0].mxu0 %v192
    %v419 = vpop.f32.mrb[0].mxu0
    %v420 = vadd.f32 0.0, %v419
    %v421 = vpop.f32.mrb[0].mxu0
    %v422 = vadd.f32 0.0, %v421
    %423 = vmatprep.mubr.f32.mxu0 0.0
    %424 = vmatmul.mubr.f32.gmra.mrb[0].mxu0 %v195
    %v425 = vpop.f32.mrb[0].mxu0
    %v426 = vadd.f32 0.0, %v425
    %v427 = vpop.f32.mrb[0].mxu0
    %v428 = vadd.f32 0.0, %v427
    %429 = vmatprep.mubr.f32.mxu0 0.0
    %430 = vmatmul.mubr.f32.gmra.mrb[0].mxu0 %v198
    %v431 = vpop.f32.mrb[0].mxu0
    %v432 = vadd.f32 0.0, %v431
    %v433 = vpop.f32.mrb[0].mxu0
    %v434 = vadd.f32 0.0, %v433
    %435 = vmatprep.mubr.f32.mxu0 0.0
    %436 = vmatmul.mubr.f32.gmra.mrb[0].mxu0 %v201
    %v437 = vpop.f32.mrb[0].mxu0
    %v438 = vadd.f32 0.0, %v437
    %v439 = vpop.f32.mrb[0].mxu0
    %v440 = vadd.f32 0.0, %v439
    %441 = vmatprep.mubr.f32.mxu0 0.0
    %442 = vmatmul.mubr.f32.gmra.mrb[0].mxu0 %v204
    %v443 = vpop.f32.mrb[0].mxu0
    %v444 = vadd.f32 0.0, %v443
    %v445 = vpop.f32.mrb[0].mxu0
    %v446 = vadd.f32 0.0, %v445
    %447 = vmatprep.mubr.f32.mxu0 0.0
    %448 = vmatmul.mubr.f32.gmra.mrb[0].mxu0 %v207
    %v449 = vpop.f32.mrb[0].mxu0
    %v450 = vadd.f32 0.0, %v449
    %v451 = vpop.f32.mrb[0].mxu0
    %v452 = vadd.f32 0.0, %v451
    %453 = vmatprep.mubr.f32.mxu0 0.0
    %454 = vmatmul.mubr.f32.gmra.mrb[0].mxu0 %v210
    %v455 = vpop.f32.mrb[0].mxu0
    %v456 = vadd.f32 0.0, %v455
    %v457 = vpop.f32.mrb[0].mxu0
    %v458 = vadd.f32 0.0, %v457
    %459 = vmatprep.mubr.f32.mxu0 0.0
    %460 = vmatmul.mubr.f32.gmra.mrb[0].mxu0 %v213
    %v461 = vpop.f32.mrb[0].mxu0
    %v462 = vadd.f32 0.0, %v461
    %v463 = vpop.f32.mrb[0].mxu0
    %v464 = vadd.f32 0.0, %v463
    %465 = vmatprep.mubr.f32.mxu0 0.0
    %466 = vmatmul.mubr.f32.gmra.mrb[0].mxu0 %v216
    %v467 = vpop.f32.mrb[0].mxu0
    %v468 = vadd.f32 0.0, %v467
    %v469 = vpop.f32.mrb[0].mxu0
    %v470 = vadd.f32 0.0, %v469
    %471 = vmatprep.mubr.f32.mxu0 0.0
    %472 = vmatmul.mubr.f32.gmra.mrb[0].mxu0 %v219
    %v473 = vpop.f32.mrb[0].mxu0
    %v474 = vadd.f32 0.0, %v473
    %v475 = vpop.f32.mrb[0].mxu0
    %v476 = vadd.f32 0.0, %v475
    %477 = vdwg.mxu0
    %478 = vst [vmem:[#allocation2] sm:$0xff] %v288
    %479 = vst [vmem:[#allocation2 + $0x8] sm:$0xff] %v290
    %480 = vst [vmem:[#allocation2 + $0x10] sm:$0xff] %v294
    %481 = vst [vmem:[#allocation2 + $0x18] sm:$0xff] %v296
    %482 = vst [vmem:[#allocation2 + $0x20] sm:$0xff] %v300
    %483 = vst [vmem:[#allocation2 + $0x28] sm:$0xff] %v302
    %484 = vst [vmem:[#allocation2 + $0x30] sm:$0xff] %v306
    %485 = vst [vmem:[#allocation2 + $0x38] sm:$0xff] %v308
    %486 = vst [vmem:[#allocation2 + $0x40] sm:$0xff] %v312
    %487 = vst [vmem:[#allocation2 + $0x48] sm:$0xff] %v314
    %488 = vst [vmem:[#allocation2 + $0x50] sm:$0xff] %v318
    %489 = vst [vmem:[#allocation2 + $0x58] sm:$0xff] %v320
    %490 = vst [vmem:[#allocation2 + $0x60] sm:$0xff] %v324
    %491 = vst [vmem:[#allocation2 + $0x68] sm:$0xff] %v326
    %492 = vst [vmem:[#allocation2 + $0x70] sm:$0xff] %v330
    %493 = vst [vmem:[#allocation2 + $0x78] sm:$0xff] %v332
    %494 = vst [vmem:[#allocation2 + $0x80] sm:$0xff] %v336
    %495 = vst [vmem:[#allocation2 + $0x88] sm:$0xff] %v338
    %496 = vst [vmem:[#allocation2 + $0x90] sm:$0xff] %v342
    %497 = vst [vmem:[#allocation2 + $0x98] sm:$0xff] %v344
    %498 = vst [vmem:[#allocation2 + $0xa0] sm:$0xff] %v348
    %499 = vst [vmem:[#allocation2 + $0xa8] sm:$0xff] %v350
    %500 = vst [vmem:[#allocation2 + $0xb0] sm:$0xff] %v354
    %501 = vst [vmem:[#allocation2 + $0xb8] sm:$0xff] %v356
    %502 = vst [vmem:[#allocation2 + $0xc0] sm:$0xff] %v360
    %503 = vst [vmem:[#allocation2 + $0xc8] sm:$0xff] %v362
    %504 = vst [vmem:[#allocation2 + $0xd0] sm:$0xff] %v366
    %505 = vst [vmem:[#allocation2 + $0xd8] sm:$0xff] %v368
    %506 = vst [vmem:[#allocation2 + $0xe0] sm:$0xff] %v372
    %507 = vst [vmem:[#allocation2 + $0xe8] sm:$0xff] %v374
    %508 = vst [vmem:[#allocation2 + $0xf0] sm:$0xff] %v378
    %509 = vst [vmem:[#allocation2 + $0xf8] sm:$0xff] %v380
    %510 = vst [vmem:[#allocation2 + $0x100] sm:$0xff] %v384
    %511 = vst [vmem:[#allocation2 + $0x108] sm:$0xff] %v386
    %512 = vst [vmem:[#allocation2 + $0x110] sm:$0xff] %v390
    %513 = vst [vmem:[#allocation2 + $0x118] sm:$0xff] %v392
    %514 = vst [vmem:[#allocation2 + $0x120] sm:$0xff] %v396
    %515 = vst [vmem:[#allocation2 + $0x128] sm:$0xff] %v398
    %516 = vst [vmem:[#allocation2 + $0x130] sm:$0xff] %v402
    %517 = vst [vmem:[#allocation2 + $0x138] sm:$0xff] %v404
    %518 = vst [vmem:[#allocation2 + $0x140] sm:$0xff] %v408
    %519 = vst [vmem:[#allocation2 + $0x148] sm:$0xff] %v410
    %520 = vst [vmem:[#allocation2 + $0x150] sm:$0xff] %v414
    %521 = vst [vmem:[#allocation2 + $0x158] sm:$0xff] %v416
    %522 = vst [vmem:[#allocation2 + $0x160] sm:$0xff] %v420
    %523 = vst [vmem:[#allocation2 + $0x168] sm:$0xff] %v422
    %524 = vst [vmem:[#allocation2 + $0x170] sm:$0xff] %v426
    %525 = vst [vmem:[#allocation2 + $0x178] sm:$0xff] %v428
    %526 = vst [vmem:[#allocation2 + $0x180] sm:$0xff] %v432
    %527 = vst [vmem:[#allocation2 + $0x188] sm:$0xff] %v434
    %528 = vst [vmem:[#allocation2 + $0x190] sm:$0xff] %v438
    %529 = vst [vmem:[#allocation2 + $0x198] sm:$0xff] %v440
    %530 = vst [vmem:[#allocation2 + $0x1a0] sm:$0xff] %v444
    %531 = vst [vmem:[#allocation2 + $0x1a8] sm:$0xff] %v446
    %532 = vst [vmem:[#allocation2 + $0x1b0] sm:$0xff] %v450
    %533 = vst [vmem:[#allocation2 + $0x1b8] sm:$0xff] %v452
    %534 = vst [vmem:[#allocation2 + $0x1c0] sm:$0xff] %v456
    %535 = vst [vmem:[#allocation2 + $0x1c8] sm:$0xff] %v458
    %536 = vst [vmem:[#allocation2 + $0x1d0] sm:$0xff] %v462
    %537 = vst [vmem:[#allocation2 + $0x1d8] sm:$0xff] %v464
    %538 = vst [vmem:[#allocation2 + $0x1e0] sm:$0xff] %v468
    %539 = vst [vmem:[#allocation2 + $0x1e8] sm:$0xff] %v470
    %540 = vst [vmem:[#allocation2 + $0x1f0] sm:$0xff] %v474
    %541 = vst [vmem:[#allocation2 + $0x1f8] sm:$0xff] %v476
    %v542 = vld [vmem:[%s0 + $0x8] sm:$0xff]
    %v544 = vsel %vm50, %v542, 0
    %546 = vmatprep.subr.mxu0 %v48
    %547 = vmatpush1.msra.mxu0 %v47
    %548 = vmatprep.subr.mxu0 0.0
    %549 = vmatpush1.msra.mxu0 0.0
    %550 = vmatprep.subr.mxu0 0.0
    %551 = vmatpush1.msra.mxu0 0.0
    %552 = vmatprep.subr.mxu0 0.0
    %553 = vmatpush1.msra.mxu0 0.0
    %554 = vmatprep.subr.mxu0 0.0
    %555 = vmatpush1.msra.mxu0 0.0
    %556 = vmatprep.subr.mxu0 0.0
    %557 = vmatpush1.msra.mxu0 0.0
    %558 = vmatprep.subr.mxu0 0.0
    %559 = vmatpush1.msra.mxu0 0.0
    %560 = vmatprep.subr.mxu0 0.0
    %561 = vmatpush1.msra.mxu0 0.0
    %562 = vmatprep.subr.mxu0 0.0
    %563 = vmatpush1.msra.mxu0 0.0
    %564 = vmatprep.subr.mxu0 0.0
    %565 = vmatpush1.msra.mxu0 0.0
    %566 = vmatprep.subr.mxu0 0.0
    %567 = vmatpush1.msra.mxu0 0.0
    %568 = vmatprep.subr.mxu0 0.0
    %569 = vmatpush1.msra.mxu0 0.0
    %570 = vmatprep.subr.mxu0 0.0
    %571 = vmatpush1.msra.mxu0 0.0
    %572 = vmatprep.subr.mxu0 0.0
    %573 = vmatpush1.msra.mxu0 0.0
    %574 = vmatprep.subr.mxu0 0.0
    %575 = vmatpush1.msra.mxu0 0.0
    %576 = vmatprep.subr.mxu0 0.0
    %577 = vmatpush1.msra.mxu0 0.0
    %578 = vmatprep.subr.mxu0 0.0
    %579 = vmatpush1.msra.mxu0 0.0
    %580 = vmatprep.subr.mxu0 0.0
    %581 = vmatpush1.msra.mxu0 0.0
    %582 = vmatprep.subr.mxu0 0.0
    %583 = vmatpush1.msra.mxu0 0.0
    %584 = vmatprep.subr.mxu0 0.0
    %585 = vmatpush1.msra.mxu0 0.0
    %586 = vmatprep.subr.mxu0 0.0
    %587 = vmatpush1.msra.mxu0 0.0
    %588 = vmatprep.subr.mxu0 0.0
    %589 = vmatpush1.msra.mxu0 0.0
    %590 = vmatprep.subr.mxu0 0.0
    %591 = vmatpush1.msra.mxu0 0.0
    %592 = vmatprep.subr.mxu0 0.0
    %593 = vmatpush1.msra.mxu0 0.0
    %594 = vmatprep.subr.mxu0 0.0
    %595 = vmatpush1.msra.mxu0 0.0
    %596 = vmatprep.subr.mxu0 0.0
    %597 = vmatpush1.msra.mxu0 0.0
    %598 = vmatprep.subr.mxu0 0.0
    %599 = vmatpush1.msra.mxu0 0.0
    %600 = vmatprep.subr.mxu0 0.0
    %601 = vmatpush1.msra.mxu0 0.0
    %602 = vmatprep.subr.mxu0 0.0
    %603 = vmatpush1.msra.mxu0 0.0
    %604 = vmatprep.subr.mxu0 0.0
    %605 = vmatpush1.msra.mxu0 0.0
    %606 = vmatprep.subr.mxu0 0.0
    %607 = vmatpush1.msra.mxu0 0.0
    %608 = vmatprep.subr.mxu0 0.0
    %609 = vmatpush1.msra.mxu0 0.0
    %610 = vmatprep.mubr.f32.mxu0 0.0
    %611 = vmatmul.mubr.f32.gmra.mrb[0].mxu0 %v544
    %v612 = vpop.f32.mrb[0].mxu0
    %v613 = vadd.f32 0.0, %v612
    %v614 = vpop.f32.mrb[0].mxu0
    %v615 = vadd.f32 0.0, %v614
    %616 = vdwg.mxu0
    %617 = vmatprep.subr.mxu0 %v615
    %618 = vmatpush1.msra.mxu0 %v613
    %619 = vmatprep.subr.mxu0 0.0
    %620 = vmatpush1.msra.mxu0 0.0
    %621 = vmatprep.subr.mxu0 0.0
    %622 = vmatpush1.msra.mxu0 0.0
    %623 = vmatprep.subr.mxu0 0.0
    %624 = vmatpush1.msra.mxu0 0.0
    %625 = vmatprep.subr.mxu0 0.0
    %626 = vmatpush1.msra.mxu0 0.0
    %627 = vmatprep.subr.mxu0 0.0
    %628 = vmatpush1.msra.mxu0 0.0
    %629 = vmatprep.subr.mxu0 0.0
    %630 = vmatpush1.msra.mxu0 0.0
    %631 = vmatprep.subr.mxu0 0.0
    %632 = vmatpush1.msra.mxu0 0.0
    %633 = vmatprep.subr.mxu0 0.0
    %634 = vmatpush1.msra.mxu0 0.0
    %635 = vmatprep.subr.mxu0 0.0
    %636 = vmatpush1.msra.mxu0 0.0
    %637 = vmatprep.subr.mxu0 0.0
    %638 = vmatpush1.msra.mxu0 0.0
    %639 = vmatprep.subr.mxu0 0.0
    %640 = vmatpush1.msra.mxu0 0.0
    %641 = vmatprep.subr.mxu0 0.0
    %642 = vmatpush1.msra.mxu0 0.0
    %643 = vmatprep.subr.mxu0 0.0
    %644 = vmatpush1.msra.mxu0 0.0
    %645 = vmatprep.subr.mxu0 0.0
    %646 = vmatpush1.msra.mxu0 0.0
    %647 = vmatprep.subr.mxu0 0.0
    %648 = vmatpush1.msra.mxu0 0.0
    %649 = vmatprep.subr.mxu0 0.0
    %650 = vmatpush1.msra.mxu0 0.0
    %651 = vmatprep.subr.mxu0 0.0
    %652 = vmatpush1.msra.mxu0 0.0
    %653 = vmatprep.subr.mxu0 0.0
    %654 = vmatpush1.msra.mxu0 0.0
    %655 = vmatprep.subr.mxu0 0.0
    %656 = vmatpush1.msra.mxu0 0.0
    %657 = vmatprep.subr.mxu0 0.0
    %658 = vmatpush1.msra.mxu0 0.0
    %659 = vmatprep.subr.mxu0 0.0
    %660 = vmatpush1.msra.mxu0 0.0
    %661 = vmatprep.subr.mxu0 0.0
    %662 = vmatpush1.msra.mxu0 0.0
    %663 = vmatprep.subr.mxu0 0.0
    %664 = vmatpush1.msra.mxu0 0.0
    %665 = vmatprep.subr.mxu0 0.0
    %666 = vmatpush1.msra.mxu0 0.0
    %667 = vmatprep.subr.mxu0 0.0
    %668 = vmatpush1.msra.mxu0 0.0
    %669 = vmatprep.subr.mxu0 0.0
    %670 = vmatpush1.msra.mxu0 0.0
    %671 = vmatprep.subr.mxu0 0.0
    %672 = vmatpush1.msra.mxu0 0.0
    %673 = vmatprep.subr.mxu0 0.0
    %674 = vmatpush1.msra.mxu0 0.0
    %675 = vmatprep.subr.mxu0 0.0
    %676 = vmatpush1.msra.mxu0 0.0
    %677 = vmatprep.subr.mxu0 0.0
    %678 = vmatpush1.msra.mxu0 0.0
    %679 = vmatprep.subr.mxu0 0.0
    %680 = vmatpush1.msra.mxu0 0.0
    %681 = vmatprep.mubr.f32.mxu0 0.0
    %682 = vmatmul.mubr.f32.gmra.mrb[0].mxu0 %v126
    %v683 = vpop.f32.mrb[0].mxu0
    %v684 = vadd.f32 0.0, %v683
    %v685 = vpop.f32.mrb[0].mxu0
    %v686 = vadd.f32 0.0, %v685
    %687 = vmatprep.mubr.f32.mxu0 0.0
    %688 = vmatmul.mubr.f32.gmra.mrb[0].mxu0 %v129
    %v689 = vpop.f32.mrb[0].mxu0
    %v690 = vadd.f32 0.0, %v689
    %v691 = vpop.f32.mrb[0].mxu0
    %v692 = vadd.f32 0.0, %v691
    %693 = vmatprep.mubr.f32.mxu0 0.0
    %694 = vmatmul.mubr.f32.gmra.mrb[0].mxu0 %v132
    %v695 = vpop.f32.mrb[0].mxu0
    %v696 = vadd.f32 0.0, %v695
    %v697 = vpop.f32.mrb[0].mxu0
    %v698 = vadd.f32 0.0, %v697
    %699 = vmatprep.mubr.f32.mxu0 0.0
    %700 = vmatmul.mubr.f32.gmra.mrb[0].mxu0 %v135
    %v701 = vpop.f32.mrb[0].mxu0
    %v702 = vadd.f32 0.0, %v701
    %v703 = vpop.f32.mrb[0].mxu0
    %v704 = vadd.f32 0.0, %v703
    %705 = vmatprep.mubr.f32.mxu0 0.0
    %706 = vmatmul.mubr.f32.gmra.mrb[0].mxu0 %v138
    %v707 = vpop.f32.mrb[0].mxu0
    %v708 = vadd.f32 0.0, %v707
    %v709 = vpop.f32.mrb[0].mxu0
    %v710 = vadd.f32 0.0, %v709
    %711 = vmatprep.mubr.f32.mxu0 0.0
    %712 = vmatmul.mubr.f32.gmra.mrb[0].mxu0 %v141
    %v713 = vpop.f32.mrb[0].mxu0
    %v714 = vadd.f32 0.0, %v713
    %v715 = vpop.f32.mrb[0].mxu0
    %v716 = vadd.f32 0.0, %v715
    %717 = vmatprep.mubr.f32.mxu0 0.0
    %718 = vmatmul.mubr.f32.gmra.mrb[0].mxu0 %v144
    %v719 = vpop.f32.mrb[0].mxu0
    %v720 = vadd.f32 0.0, %v719
    %v721 = vpop.f32.mrb[0].mxu0
    %v722 = vadd.f32 0.0, %v721
    %723 = vmatprep.mubr.f32.mxu0 0.0
    %724 = vmatmul.mubr.f32.gmra.mrb[0].mxu0 %v147
    %v725 = vpop.f32.mrb[0].mxu0
    %v726 = vadd.f32 0.0, %v725
    %v727 = vpop.f32.mrb[0].mxu0
    %v728 = vadd.f32 0.0, %v727
    %729 = vmatprep.mubr.f32.mxu0 0.0
    %730 = vmatmul.mubr.f32.gmra.mrb[0].mxu0 %v150
    %v731 = vpop.f32.mrb[0].mxu0
    %v732 = vadd.f32 0.0, %v731
    %v733 = vpop.f32.mrb[0].mxu0
    %v734 = vadd.f32 0.0, %v733
    %735 = vmatprep.mubr.f32.mxu0 0.0
    %736 = vmatmul.mubr.f32.gmra.mrb[0].mxu0 %v153
    %v737 = vpop.f32.mrb[0].mxu0
    %v738 = vadd.f32 0.0, %v737
    %v739 = vpop.f32.mrb[0].mxu0
    %v740 = vadd.f32 0.0, %v739
    %741 = vmatprep.mubr.f32.mxu0 0.0
    %742 = vmatmul.mubr.f32.gmra.mrb[0].mxu0 %v156
    %v743 = vpop.f32.mrb[0].mxu0
    %v744 = vadd.f32 0.0, %v743
    %v745 = vpop.f32.mrb[0].mxu0
    %v746 = vadd.f32 0.0, %v745
    %747 = vmatprep.mubr.f32.mxu0 0.0
    %748 = vmatmul.mubr.f32.gmra.mrb[0].mxu0 %v159
    %v749 = vpop.f32.mrb[0].mxu0
    %v750 = vadd.f32 0.0, %v749
    %v751 = vpop.f32.mrb[0].mxu0
    %v752 = vadd.f32 0.0, %v751
    %753 = vmatprep.mubr.f32.mxu0 0.0
    %754 = vmatmul.mubr.f32.gmra.mrb[0].mxu0 %v162
    %v755 = vpop.f32.mrb[0].mxu0
    %v756 = vadd.f32 0.0, %v755
    %v757 = vpop.f32.mrb[0].mxu0
    %v758 = vadd.f32 0.0, %v757
    %759 = vmatprep.mubr.f32.mxu0 0.0
    %760 = vmatmul.mubr.f32.gmra.mrb[0].mxu0 %v165
    %v761 = vpop.f32.mrb[0].mxu0
    %v762 = vadd.f32 0.0, %v761
    %v763 = vpop.f32.mrb[0].mxu0
    %v764 = vadd.f32 0.0, %v763
    %765 = vmatprep.mubr.f32.mxu0 0.0
    %766 = vmatmul.mubr.f32.gmra.mrb[0].mxu0 %v168
    %v767 = vpop.f32.mrb[0].mxu0
    %v768 = vadd.f32 0.0, %v767
    %v769 = vpop.f32.mrb[0].mxu0
    %v770 = vadd.f32 0.0, %v769
    %771 = vmatprep.mubr.f32.mxu0 0.0
    %772 = vmatmul.mubr.f32.gmra.mrb[0].mxu0 %v171
    %v773 = vpop.f32.mrb[0].mxu0
    %v774 = vadd.f32 0.0, %v773
    %v775 = vpop.f32.mrb[0].mxu0
    %v776 = vadd.f32 0.0, %v775
    %777 = vmatprep.mubr.f32.mxu0 0.0
    %778 = vmatmul.mubr.f32.gmra.mrb[0].mxu0 %v174
    %v779 = vpop.f32.mrb[0].mxu0
    %v780 = vadd.f32 0.0, %v779
    %v781 = vpop.f32.mrb[0].mxu0
    %v782 = vadd.f32 0.0, %v781
    %783 = vmatprep.mubr.f32.mxu0 0.0
    %784 = vmatmul.mubr.f32.gmra.mrb[0].mxu0 %v177
    %v785 = vpop.f32.mrb[0].mxu0
    %v786 = vadd.f32 0.0, %v785
    %v787 = vpop.f32.mrb[0].mxu0
    %v788 = vadd.f32 0.0, %v787
    %789 = vmatprep.mubr.f32.mxu0 0.0
    %790 = vmatmul.mubr.f32.gmra.mrb[0].mxu0 %v180
    %v791 = vpop.f32.mrb[0].mxu0
    %v792 = vadd.f32 0.0, %v791
    %v793 = vpop.f32.mrb[0].mxu0
    %v794 = vadd.f32 0.0, %v793
    %795 = vmatprep.mubr.f32.mxu0 0.0
    %796 = vmatmul.mubr.f32.gmra.mrb[0].mxu0 %v183
    %v797 = vpop.f32.mrb[0].mxu0
    %v798 = vadd.f32 0.0, %v797
    %v799 = vpop.f32.mrb[0].mxu0
    %v800 = vadd.f32 0.0, %v799
    %801 = vmatprep.mubr.f32.mxu0 0.0
    %802 = vmatmul.mubr.f32.gmra.mrb[0].mxu0 %v186
    %v803 = vpop.f32.mrb[0].mxu0
    %v804 = vadd.f32 0.0, %v803
    %v805 = vpop.f32.mrb[0].mxu0
    %v806 = vadd.f32 0.0, %v805
    %807 = vmatprep.mubr.f32.mxu0 0.0
    %808 = vmatmul.mubr.f32.gmra.mrb[0].mxu0 %v189
    %v809 = vpop.f32.mrb[0].mxu0
    %v810 = vadd.f32 0.0, %v809
    %v811 = vpop.f32.mrb[0].mxu0
    %v812 = vadd.f32 0.0, %v811
    %813 = vmatprep.mubr.f32.mxu0 0.0
    %814 = vmatmul.mubr.f32.gmra.mrb[0].mxu0 %v192
    %v815 = vpop.f32.mrb[0].mxu0
    %v816 = vadd.f32 0.0, %v815
    %v817 = vpop.f32.mrb[0].mxu0
    %v818 = vadd.f32 0.0, %v817
    %819 = vmatprep.mubr.f32.mxu0 0.0
    %820 = vmatmul.mubr.f32.gmra.mrb[0].mxu0 %v195
    %v821 = vpop.f32.mrb[0].mxu0
    %v822 = vadd.f32 0.0, %v821
    %v823 = vpop.f32.mrb[0].mxu0
    %v824 = vadd.f32 0.0, %v823
    %825 = vmatprep.mubr.f32.mxu0 0.0
    %826 = vmatmul.mubr.f32.gmra.mrb[0].mxu0 %v198
    %v827 = vpop.f32.mrb[0].mxu0
    %v828 = vadd.f32 0.0, %v827
    %v829 = vpop.f32.mrb[0].mxu0
    %v830 = vadd.f32 0.0, %v829
    %831 = vmatprep.mubr.f32.mxu0 0.0
    %832 = vmatmul.mubr.f32.gmra.mrb[0].mxu0 %v201
    %v833 = vpop.f32.mrb[0].mxu0
    %v834 = vadd.f32 0.0, %v833
    %v835 = vpop.f32.mrb[0].mxu0
    %v836 = vadd.f32 0.0, %v835
    %837 = vmatprep.mubr.f32.mxu0 0.0
    %838 = vmatmul.mubr.f32.gmra.mrb[0].mxu0 %v204
    %v839 = vpop.f32.mrb[0].mxu0
    %v840 = vadd.f32 0.0, %v839
    %v841 = vpop.f32.mrb[0].mxu0
    %v842 = vadd.f32 0.0, %v841
    %843 = vmatprep.mubr.f32.mxu0 0.0
    %844 = vmatmul.mubr.f32.gmra.mrb[0].mxu0 %v207
    %v845 = vpop.f32.mrb[0].mxu0
    %v846 = vadd.f32 0.0, %v845
    %v847 = vpop.f32.mrb[0].mxu0
    %v848 = vadd.f32 0.0, %v847
    %849 = vmatprep.mubr.f32.mxu0 0.0
    %850 = vmatmul.mubr.f32.gmra.mrb[0].mxu0 %v210
    %v851 = vpop.f32.mrb[0].mxu0
    %v852 = vadd.f32 0.0, %v851
    %v853 = vpop.f32.mrb[0].mxu0
    %v854 = vadd.f32 0.0, %v853
    %855 = vmatprep.mubr.f32.mxu0 0.0
    %856 = vmatmul.mubr.f32.gmra.mrb[0].mxu0 %v213
    %v857 = vpop.f32.mrb[0].mxu0
    %v858 = vadd.f32 0.0, %v857
    %v859 = vpop.f32.mrb[0].mxu0
    %v860 = vadd.f32 0.0, %v859
    %861 = vmatprep.mubr.f32.mxu0 0.0
    %862 = vmatmul.mubr.f32.gmra.mrb[0].mxu0 %v216
    %v863 = vpop.f32.mrb[0].mxu0
    %v864 = vadd.f32 0.0, %v863
    %v865 = vpop.f32.mrb[0].mxu0
    %v866 = vadd.f32 0.0, %v865
    %867 = vmatprep.mubr.f32.mxu0 0.0
    %868 = vmatmul.mubr.f32.gmra.mrb[0].mxu0 %v219
    %v869 = vpop.f32.mrb[0].mxu0
    %v870 = vadd.f32 0.0, %v869
    %v871 = vpop.f32.mrb[0].mxu0
    %v872 = vadd.f32 0.0, %v871
    %873 = vdwg.mxu0
    %s874 = scalar_lea.vmem [#allocation2], 512
    %875 = vst [vmem:[%s874] sm:$0xff] %v684
    %876 = vst [vmem:[%s874 + $0x8] sm:$0xff] %v686
    %877 = vst [vmem:[%s874 + $0x10] sm:$0xff] %v690
    %878 = vst [vmem:[%s874 + $0x18] sm:$0xff] %v692
    %879 = vst [vmem:[%s874 + $0x20] sm:$0xff] %v696
    %880 = vst [vmem:[%s874 + $0x28] sm:$0xff] %v698
    %881 = vst [vmem:[%s874 + $0x30] sm:$0xff] %v702
    %882 = vst [vmem:[%s874 + $0x38] sm:$0xff] %v704
    %883 = vst [vmem:[%s874 + $0x40] sm:$0xff] %v708
    %884 = vst [vmem:[%s874 + $0x48] sm:$0xff] %v710
    %885 = vst [vmem:[%s874 + $0x50] sm:$0xff] %v714
    %886 = vst [vmem:[%s874 + $0x58] sm:$0xff] %v716
    %887 = vst [vmem:[%s874 + $0x60] sm:$0xff] %v720
    %888 = vst [vmem:[%s874 + $0x68] sm:$0xff] %v722
    %889 = vst [vmem:[%s874 + $0x70] sm:$0xff] %v726
    %890 = vst [vmem:[%s874 + $0x78] sm:$0xff] %v728
    %891 = vst [vmem:[%s874 + $0x80] sm:$0xff] %v732
    %892 = vst [vmem:[%s874 + $0x88] sm:$0xff] %v734
    %893 = vst [vmem:[%s874 + $0x90] sm:$0xff] %v738
    %894 = vst [vmem:[%s874 + $0x98] sm:$0xff] %v740
    %895 = vst [vmem:[%s874 + $0xa0] sm:$0xff] %v744
    %896 = vst [vmem:[%s874 + $0xa8] sm:$0xff] %v746
    %897 = vst [vmem:[%s874 + $0xb0] sm:$0xff] %v750
    %898 = vst [vmem:[%s874 + $0xb8] sm:$0xff] %v752
    %899 = vst [vmem:[%s874 + $0xc0] sm:$0xff] %v756
    %900 = vst [vmem:[%s874 + $0xc8] sm:$0xff] %v758
    %901 = vst [vmem:[%s874 + $0xd0] sm:$0xff] %v762
    %902 = vst [vmem:[%s874 + $0xd8] sm:$0xff] %v764
    %903 = vst [vmem:[%s874 + $0xe0] sm:$0xff] %v768
    %904 = vst [vmem:[%s874 + $0xe8] sm:$0xff] %v770
    %905 = vst [vmem:[%s874 + $0xf0] sm:$0xff] %v774
    %906 = vst [vmem:[%s874 + $0xf8] sm:$0xff] %v776
    %907 = vst [vmem:[%s874 + $0x100] sm:$0xff] %v780
    %908 = vst [vmem:[%s874 + $0x108] sm:$0xff] %v782
    %909 = vst [vmem:[%s874 + $0x110] sm:$0xff] %v786
    %910 = vst [vmem:[%s874 + $0x118] sm:$0xff] %v788
    %911 = vst [vmem:[%s874 + $0x120] sm:$0xff] %v792
    %912 = vst [vmem:[%s874 + $0x128] sm:$0xff] %v794
    %913 = vst [vmem:[%s874 + $0x130] sm:$0xff] %v798
    %914 = vst [vmem:[%s874 + $0x138] sm:$0xff] %v800
    %915 = vst [vmem:[%s874 + $0x140] sm:$0xff] %v804
    %916 = vst [vmem:[%s874 + $0x148] sm:$0xff] %v806
    %917 = vst [vmem:[%s874 + $0x150] sm:$0xff] %v810
    %918 = vst [vmem:[%s874 + $0x158] sm:$0xff] %v812
    %919 = vst [vmem:[%s874 + $0x160] sm:$0xff] %v816
    %920 = vst [vmem:[%s874 + $0x168] sm:$0xff] %v818
    %921 = vst [vmem:[%s874 + $0x170] sm:$0xff] %v822
    %922 = vst [vmem:[%s874 + $0x178] sm:$0xff] %v824
    %923 = vst [vmem:[%s874 + $0x180] sm:$0xff] %v828
    %924 = vst [vmem:[%s874 + $0x188] sm:$0xff] %v830
    %925 = vst [vmem:[%s874 + $0x190] sm:$0xff] %v834
    %926 = vst [vmem:[%s874 + $0x198] sm:$0xff] %v836
    %927 = vst [vmem:[%s874 + $0x1a0] sm:$0xff] %v840
    %928 = vst [vmem:[%s874 + $0x1a8] sm:$0xff] %v842
    %929 = vst [vmem:[%s874 + $0x1b0] sm:$0xff] %v846
    %930 = vst [vmem:[%s874 + $0x1b8] sm:$0xff] %v848
    %931 = vst [vmem:[%s874 + $0x1c0] sm:$0xff] %v852
    %932 = vst [vmem:[%s874 + $0x1c8] sm:$0xff] %v854
    %933 = vst [vmem:[%s874 + $0x1d0] sm:$0xff] %v858
    %934 = vst [vmem:[%s874 + $0x1d8] sm:$0xff] %v860
    %935 = vst [vmem:[%s874 + $0x1e0] sm:$0xff] %v864
    %936 = vst [vmem:[%s874 + $0x1e8] sm:$0xff] %v866
    %937 = vst [vmem:[%s874 + $0x1f0] sm:$0xff] %v870
    %938 = vst [vmem:[%s874 + $0x1f8] sm:$0xff] %v872
    // Predicated region
    $region14: #{tpu_custom_call.1} parent=1 // pred_check
      _
    $region15: #{tpu_custom_call.1} parent=1 // pred_check_branch
      %940 = sbr.rel (0) target = $region17
    $region16: #{tpu_custom_call.1} parent=1 // pred_region
      %s942 = ssub.s32 16384, 16384
      %943 = vsyncadd [#allocation3], %s942
      %s944 = sshll.u32 [#allocation2], 4
      %s945 = int_to_ptr.vmem [resolvable:$true] %s944
      %950 = dma.vmem_to_hbm [thread:$0]  %s945, 16384, %s3, [#allocation3], 256, 256, 16
    $region17: #{tpu_custom_call.1} parent=1 // pred_fallthru
      _
    // Predicated region
    $region18: #{tpu_custom_call.1} parent=1 // pred_check
      _
    $region19: #{tpu_custom_call.1} parent=1 // pred_check_branch
      %952 = sbr.rel (0) target = $region21
    $region20: #{tpu_custom_call.1} parent=1 // pred_region
      %953 = dma.done [#allocation3], 16384
    $region21: #{tpu_custom_call.1} parent=1 // pred_fallthru
      _
    %954 = vsyncpa [#allocation3], 1

</llo_original>
